<compile_context>
chip_gen: v5e
topology: v5e:2x2
jax: 0.10.0
libtpu: 0.0.40
codegen_flags: <defaults>
</compile_context>

<pallas_src>
import jax
import jax.numpy as jnp
from jax import lax
from jax.experimental import pallas as pl
from jax.experimental.pallas import tpu as pltpu

_MIB = 1024 * 1024


def _net_kernel(x_ref, lens_ref, w_ref, b_ref, logits_ref, sum_acc, cnt_acc):
    """Accumulating masked-mean pooling + linear head.

    Grid: (batch tiles [parallel], seq tiles [arbitrary, reduction]).

    x_ref:      (TB, TS, H) f32/bf16  last_hidden_state tile (native dtype)
    lens_ref:   (TB, 1, 1)  int32     per-row valid-token counts
    w_ref:      (C, H)      f32       head weight (torch Linear layout, lane-dense H)
    b_ref:      (1, C)      f32       head bias
    logits_ref: (TB, C)     f32       output logits tile (resident across seq axis)
    sum_acc:    (TB, H)     f32 VMEM  masked-sum accumulator
    cnt_acc:    (TB, 1)     f32 VMEM  token-count accumulator
    """
    s = pl.program_id(1)

    @pl.when(s == 0)
    def _():
        sum_acc[...] = jnp.zeros_like(sum_acc)
        cnt_acc[...] = jnp.zeros_like(cnt_acc)

    x = x_ref[...]                                   # (TB, TS, H), native dtype
    tb, ts, _ = x_ref.shape

    # Rebuild the (prefix) attention mask in-vreg from per-row token counts:
    # no mask DMA, no lane-padded (TB, TS, 1) input buffer.
    # TODO(synk): assumes an HF-style prefix mask (1s then 0s); arbitrary
    #             scattered masks would require streaming the mask itself.
    pos = lax.broadcasted_iota(jnp.int32, (tb, ts, 1), 1) + s * ts
    valid = (pos < lens_ref[...]).astype(x.dtype)    # (TB, TS, 1), {0, 1}

    # {0,1} mask -> product exact in the input dtype; accumulate in f32.
    sum_acc[...] += jnp.sum(x * valid, axis=1, dtype=jnp.float32)
    cnt_acc[...] += jnp.sum(valid, axis=1, dtype=jnp.float32)

    @pl.when(s == pl.num_programs(1) - 1)
    def _():
        # torch.clamp(sum_mask, min=1e-9); exact divide, runs once per batch tile.
        denom = jnp.maximum(cnt_acc[...], 1e-9)          # (TB, 1)
        mean = sum_acc[...] / denom                      # (TB, H)
        # head: mean @ W.T + b without materializing a transpose
        # (contract mean's H axis against the (C, H) weight's H axis).
        logits = lax.dot_general(
            mean, w_ref[...],
            dimension_numbers=(((1,), (1,)), ((), ())),
            preferred_element_type=jnp.float32)
        logits_ref[...] = (logits + b_ref[...]).astype(logits_ref.dtype)


def _vmem_capacity_bytes(default=64 * _MIB):
    try:
        cap = getattr(pltpu.get_tpu_info(), "vmem_capacity_bytes", None)
        if cap:
            return int(cap)
    except Exception:
        pass
    return default


def _pick_batch_tile(B):
    if B <= 8:
        return B            # block dim == full array dim satisfies the sublane rule
    if B % 8 == 0:
        return 8            # B >= 16 -> >= 2 batch tiles (both v7x TensorCores busy)
    return B                # rare non-multiple-of-8 batch: one full-batch tile


def _pick_seq_tile(S, cap_elems):
    """Returns (TS, S_pad). TS is either S (full dim) or a multiple of 128 <= cap.
    Pads S only when no 128-aligned divisor exists (never a whole-axis blowup)."""
    if S <= cap_elems:
        return S, S
    t = (cap_elems // 128) * 128
    while t >= 128:
        if S % t == 0:
            return t, S
        t -= 128
    ts = max(128, (cap_elems // 128) * 128)
    return ts, ((S + ts - 1) // ts) * ts


def net_forward(last_hidden_state, attention_mask, head_w, head_b,
                targets=None, calculate_loss=True):
    """Pallas-backed equivalent of Net.forward (Mean pool + Linear head).

    `last_hidden_state` is streamed in its own dtype (pass bf16 directly if the
    backbone emits bf16 — do NOT cast here, that would add an HBM pass)."""
    B, S, H = last_hidden_state.shape
    C = head_w.shape[0]

    x = last_hidden_state
    # Per-row valid-token counts (tiny; replaces the full mask input).
    lens3 = jnp.sum(attention_mask.astype(jnp.float32), axis=1)
    lens3 = lens3.astype(jnp.int32).reshape(B, 1, 1)

    w = head_w.astype(jnp.float32)                  # (C, H), lane-dense in H
    b2d = head_b.reshape(1, C).astype(jnp.float32)

    itemsize = jnp.dtype(x.dtype).itemsize
    vmem_cap = _vmem_capacity_bytes()
    # ~vmem/10 per x tile (4-16 MiB): room for 2 pipeline buffers plus ~1-2
    # tiles of in-kernel temporaries.  v7x(64MiB)->6.4MiB, v5e/v6e(128MiB)->12.8MiB.
    tile_target = max(4 * _MIB, min(vmem_cap // 10, 16 * _MIB))
    vmem_limit = max(32 * _MIB, min((vmem_cap * 3) // 4, 96 * _MIB))

    TB = _pick_batch_tile(B)
    ts_cap = max(128, tile_target // max(1, TB * H * itemsize))
    TS, S_pad = _pick_seq_tile(S, ts_cap)
    if S_pad != S:
        # Rare path: no 128-aligned divisor of S <= cap. Padded positions have
        # pos >= lens so the in-kernel mask zeroes them.
        x = jnp.pad(x, ((0, 0), (0, S_pad - S), (0, 0)))

    grid = (B // TB, S_pad // TS)

    flops = 2 * B * S * H + 2 * B * H * C
    bytes_accessed = (B * S_pad * H * itemsize + lens3.size * 4
                      + w.size * 4 + b2d.size * 4 + B * C * 4)

    logits = pl.pallas_call(
        _net_kernel,
        out_shape=jax.ShapeDtypeStruct((B, C), jnp.float32),
        grid_spec=pltpu.PrefetchScalarGridSpec(
            num_scalar_prefetch=0,
            grid=grid,
            in_specs=[
                pl.BlockSpec((TB, TS, H), lambda bi, si: (bi, si, 0)),
                pl.BlockSpec((TB, 1, 1), lambda bi, si: (bi, 0, 0)),
                pl.BlockSpec((C, H), lambda bi, si: (0, 0)),
                pl.BlockSpec((1, C), lambda bi, si: (0, 0)),
            ],
            out_specs=pl.BlockSpec((TB, C), lambda bi, si: (bi, 0)),
            scratch_shapes=[
                pltpu.VMEM((TB, H), jnp.float32),   # masked-sum accumulator
                pltpu.VMEM((TB, 1), jnp.float32),   # token-count accumulator
            ],
        ),
        compiler_params=pltpu.CompilerParams(
            # batch sharded across TensorCores (v7x); reduction (seq) axis last.
            dimension_semantics=("parallel", "arbitrary"),
            vmem_limit_bytes=int(vmem_limit),
        ),
        cost_estimate=pl.CostEstimate(
            flops=int(flops),
            transcendentals=0,
            bytes_accessed=int(bytes_accessed)),
    )(x, lens3, w, b2d)

    outputs = {"logits": logits}
    if targets is not None:
        outputs["target"] = targets
    if calculate_loss and targets is not None:
        # torch.nn.CrossEntropyLoss with integer class targets (glue, plain JAX)
        log_probs = jax.nn.log_softmax(logits, axis=-1)
        nll = -jnp.take_along_axis(log_probs, targets[:, None], axis=-1)[:, 0]
        outputs["loss"] = jnp.mean(nll)
    return outputs


if __name__ == "__main__":
    # Small shapes consistent with the module's forward path.
    B, S, H = 2, 8, 32          # batch, seq_len, hidden_size
    NUM_CLASSES = 2
    INITIALIZER_RANGE = 0.02    # self.config.initializer_range

    key = jax.random.PRNGKey(0)
    k_x, k_w, k_t = jax.random.split(key, 3)

    # Stand-in for AutoModel(...).last_hidden_state
    last_hidden_state = jax.random.normal(k_x, (B, S, H), dtype=jnp.float32)

    # attention_mask: HF-style prefix mask (valid tokens, then padding)
    lengths = jnp.array([S, S - 3], dtype=jnp.int32)
    attention_mask = (jnp.arange(S)[None, :] < lengths[:, None]).astype(jnp.float32)

    # Head parameters (_init_weights: normal(0, initializer_range), bias = 0)
    head_w = INITIALIZER_RANGE * jax.random.normal(
        k_w, (NUM_CLASSES, H), dtype=jnp.float32)
    head_b = jnp.zeros((NUM_CLASSES,), dtype=jnp.float32)

    targets = jax.random.randint(k_t, (B,), 0, NUM_CLASSES)

    outputs = net_forward(last_hidden_state, attention_mask, head_w, head_b,
                          targets=targets, calculate_loss=True)
    jax.block_until_ready(outputs["logits"])
    jax.block_until_ready(outputs["loss"])

    # Pure-JAX reference (MeanPooling + Linear head), all f32 — kernel path is
    # f32 too now that the wrapper no longer down-casts the hidden state.
    mask_e = attention_mask[:, :, None]
    mean_ref = (last_hidden_state * mask_e).sum(1) / jnp.maximum(mask_e.sum(1), 1e-9)
    logits_ref = mean_ref @ head_w.T + head_b
    assert jnp.allclose(outputs["logits"], logits_ref, atol=1e-4, rtol=1e-4), "mismatch"

    print("KERNEL_OK")
</pallas_src>

<mosaic_0001>
module attributes {stable_mosaic.version = 11 : i64} {
  func.func @_net_kernel(%arg0: i32, %arg1: i32, %arg2: memref<2x8x32xf32, #tpu.memory_space<vmem>>, %arg3: memref<2x1x1xi32, #tpu.memory_space<vmem>>, %arg4: memref<2x32xf32, #tpu.memory_space<vmem>>, %arg5: memref<1x2xf32, #tpu.memory_space<vmem>>, %arg6: memref<2x2xf32, #tpu.memory_space<vmem>>, %arg7: memref<2x32xf32, #tpu.memory_space<vmem>>, %arg8: memref<2x1xf32, #tpu.memory_space<vmem>>) attributes {dimension_semantics = [#tpu.dimension_semantics<parallel>, #tpu.dimension_semantics<arbitrary>], iteration_bounds = array<i64: 1, 1>, scalar_prefetch = 0 : i64, scratch_operands = 2 : i64, tpu.core_type = #tpu.core_type<tc>, window_params = [{transform_indices = @transform_0, window_bounds = array<i64: 2, 8, 32>}, {transform_indices = @transform_1, window_bounds = array<i64: 2, 1, 1>}, {pipeline_mode = #tpu.pipeline_mode<synchronous>, transform_indices = @transform_2, window_bounds = array<i64: 2, 32>}, {pipeline_mode = #tpu.pipeline_mode<synchronous>, transform_indices = @transform_3, window_bounds = array<i64: 1, 2>}, {transform_indices = @transform_4, window_bounds = array<i64: 2, 2>}]} {
    %c0_i32 = arith.constant 0 : i32
    %0 = arith.cmpi eq, %arg1, %c0_i32 : i32
    %1 = arith.extui %0 : i1 to i32
    %c0_i32_0 = arith.constant 0 : i32
    %2 = arith.cmpi ne, %1, %c0_i32_0 : i32
    scf.if %2 {
      %cst_17 = arith.constant 0.000000e+00 : f32
      %26 = vector.broadcast %cst_17 : f32 to vector<2x32xf32>
      %c0_18 = arith.constant 0 : index
      %c0_19 = arith.constant 0 : index
      %27 = vector.load %arg7[%c0_18, %c0_19] : memref<2x32xf32, #tpu.memory_space<vmem>>, vector<2x32xf32>
      tpu.vector_store %arg7[%c0_18, %c0_19], %26 {strides = array<i32>} : memref<2x32xf32, #tpu.memory_space<vmem>>, vector<2x32xf32>,
      %cst_20 = arith.constant 0.000000e+00 : f32
      %28 = vector.broadcast %cst_20 : f32 to vector<2x1xf32>
      %c0_21 = arith.constant 0 : index
      %c0_22 = arith.constant 0 : index
      %29 = vector.load %arg8[%c0_21, %c0_22] : memref<2x1xf32, #tpu.memory_space<vmem>>, vector<2x1xf32>
      tpu.vector_store %arg8[%c0_21, %c0_22], %28 {strides = array<i32>} : memref<2x1xf32, #tpu.memory_space<vmem>>, vector<2x1xf32>,
    } else {
    }
    %c0 = arith.constant 0 : index
    %c0_1 = arith.constant 0 : index
    %c0_2 = arith.constant 0 : index
    %3 = vector.load %arg2[%c0, %c0_1, %c0_2] : memref<2x8x32xf32, #tpu.memory_space<vmem>>, vector<2x8x32xf32>
    %4 = tpu.iota {dimensions = array<i32: 1>} : vector<2x8x1xi32>
    %c8_i32 = arith.constant 8 : i32
    %5 = arith.muli %arg1, %c8_i32 : i32
    %6 = vector.broadcast %5 : i32 to vector<2x8x1xi32>
    %7 = arith.addi %4, %6 : vector<2x8x1xi32>
    %c0_3 = arith.constant 0 : index
    %c0_4 = arith.constant 0 : index
    %c0_5 = arith.constant 0 : index
    %8 = vector.load %arg3[%c0_3, %c0_4, %c0_5] : memref<2x1x1xi32, #tpu.memory_space<vmem>>, vector<2x1x1xi32>
    %9 = vector.broadcast %8 : vector<2x1x1xi32> to vector<2x8x1xi32>
    %10 = arith.cmpi slt, %7, %9 : vector<2x8x1xi32>
    %11 = arith.extui %10 : vector<2x8x1xi1> to vector<2x8x1xi32>
    %12 = arith.sitofp %11 : vector<2x8x1xi32> to vector<2x8x1xf32>
    %c0_6 = arith.constant 0 : index
    %c0_7 = arith.constant 0 : index
    %13 = vector.load %arg7[%c0_6, %c0_7] : memref<2x32xf32, #tpu.memory_space<vmem>>, vector<2x32xf32>
    %14 = vector.broadcast %12 : vector<2x8x1xf32> to vector<2x8x32xf32>
    %15 = arith.mulf %3, %14 : vector<2x8x32xf32>
    %cst = arith.constant dense<0.000000e+00> : vector<2x32xf32>
    %16 = vector.multi_reduction <add>, %15, %cst [1] : vector<2x8x32xf32> to vector<2x32xf32>
    %17 = arith.addf %13, %16 : vector<2x32xf32>
    %c0_8 = arith.constant 0 : index
    %c0_9 = arith.constant 0 : index
    %18 = vector.load %arg7[%c0_8, %c0_9] : memref<2x32xf32, #tpu.memory_space<vmem>>, vector<2x32xf32>
    tpu.vector_store %arg7[%c0_8, %c0_9], %17 {strides = array<i32>} : memref<2x32xf32, #tpu.memory_space<vmem>>, vector<2x32xf32>,
    %c0_10 = arith.constant 0 : index
    %c0_11 = arith.constant 0 : index
    %19 = vector.load %arg8[%c0_10, %c0_11] : memref<2x1xf32, #tpu.memory_space<vmem>>, vector<2x1xf32>
    %cst_12 = arith.constant dense<0.000000e+00> : vector<2x1xf32>
    %20 = vector.multi_reduction <add>, %12, %cst_12 [1] : vector<2x8x1xf32> to vector<2x1xf32>
    %21 = arith.addf %19, %20 : vector<2x1xf32>
    %c0_13 = arith.constant 0 : index
    %c0_14 = arith.constant 0 : index
    %22 = vector.load %arg8[%c0_13, %c0_14] : memref<2x1xf32, #tpu.memory_space<vmem>>, vector<2x1xf32>
    tpu.vector_store %arg8[%c0_13, %c0_14], %21 {strides = array<i32>} : memref<2x1xf32, #tpu.memory_space<vmem>>, vector<2x1xf32>,
    %c0_i32_15 = arith.constant 0 : i32
    %23 = arith.cmpi eq, %arg1, %c0_i32_15 : i32
    %24 = arith.extui %23 : i1 to i32
    %c0_i32_16 = arith.constant 0 : i32
    %25 = arith.cmpi ne, %24, %c0_i32_16 : i32
    scf.if %25 {
      %c0_17 = arith.constant 0 : index
      %c0_18 = arith.constant 0 : index
      %26 = vector.load %arg8[%c0_17, %c0_18] : memref<2x1xf32, #tpu.memory_space<vmem>>, vector<2x1xf32>
      %cst_19 = arith.constant 9.99999971E-10 : f32
      %27 = vector.broadcast %cst_19 : f32 to vector<2x1xf32>
      %28 = arith.maximumf %26, %27 : vector<2x1xf32>
      %c0_20 = arith.constant 0 : index
      %c0_21 = arith.constant 0 : index
      %29 = vector.load %arg7[%c0_20, %c0_21] : memref<2x32xf32, #tpu.memory_space<vmem>>, vector<2x32xf32>
      %30 = vector.broadcast %28 : vector<2x1xf32> to vector<2x32xf32>
      %31 = arith.divf %29, %30 : vector<2x32xf32>
      %c0_22 = arith.constant 0 : index
      %c0_23 = arith.constant 0 : index
      %32 = vector.load %arg4[%c0_22, %c0_23] : memref<2x32xf32, #tpu.memory_space<vmem>>, vector<2x32xf32>
      %cst_24 = arith.constant dense<0.000000e+00> : vector<2x2xf32>
      %33 = tpu.matmul %31, %32, %cst_24 {dimension_numbers = #tpu.dot_dimension_numbers<[1], [1], [0], [0], [0, 0, 1, 0], [], []>} : vector<2x32xf32>, vector<2x32xf32>, vector<2x2xf32> -> vector<2x2xf32>
      %c0_25 = arith.constant 0 : index
      %c0_26 = arith.constant 0 : index
      %34 = vector.load %arg5[%c0_25, %c0_26] : memref<1x2xf32, #tpu.memory_space<vmem>>, vector<1x2xf32>
      %35 = vector.broadcast %34 : vector<1x2xf32> to vector<2x2xf32>
      %36 = arith.addf %33, %35 : vector<2x2xf32>
      %c0_27 = arith.constant 0 : index
      %c0_28 = arith.constant 0 : index
      %37 = vector.load %arg6[%c0_27, %c0_28] : memref<2x2xf32, #tpu.memory_space<vmem>>, vector<2x2xf32>
      tpu.vector_store %arg6[%c0_27, %c0_28], %36 {strides = array<i32>} : memref<2x2xf32, #tpu.memory_space<vmem>>, vector<2x2xf32>,
    } else {
    }
    return
  }
  func.func @transform_0(%arg0: i32, %arg1: i32) -> (i32, i32, i32) {
    %c0_i32 = arith.constant 0 : i32
    %c0_i32_0 = arith.constant 0 : i32
    return %arg0, %arg1, %c0_i32 : i32, i32, i32
  }
  func.func @transform_1(%arg0: i32, %arg1: i32) -> (i32, i32, i32) {
    %c0_i32 = arith.constant 0 : i32
    %c0_i32_0 = arith.constant 0 : i32
    %c0_i32_1 = arith.constant 0 : i32
    return %arg0, %c0_i32, %c0_i32_0 : i32, i32, i32
  }
  func.func @transform_2(%arg0: i32, %arg1: i32) -> (i32, i32) {
    %c0_i32 = arith.constant 0 : i32
    %c0_i32_0 = arith.constant 0 : i32
    %c0_i32_1 = arith.constant 0 : i32
    return %c0_i32, %c0_i32_0 : i32, i32
  }
  func.func @transform_3(%arg0: i32, %arg1: i32) -> (i32, i32) {
    %c0_i32 = arith.constant 0 : i32
    %c0_i32_0 = arith.constant 0 : i32
    %c0_i32_1 = arith.constant 0 : i32
    return %c0_i32, %c0_i32_0 : i32, i32
  }
  func.func @transform_4(%arg0: i32, %arg1: i32) -> (i32, i32) {
    %c0_i32 = arith.constant 0 : i32
    %c0_i32_0 = arith.constant 0 : i32
    return %arg0, %c0_i32 : i32, i32
  }
}

</mosaic_0001>

<llo_original>
// kernel: tpu_custom_call.1
$region0: #{tpu_custom_call.1}
  #allocation0 [shape = 'u32[]', space=smem, size = 0x4, offset = 0x4, fixed_abs, tag = 'smem constant byte address 0x4 - core index']
  #allocation1 [shape = 'u32[72,128]{1,0:T(1,128)}', space=vmem, size = 0x9000, scoped, tag = 'internal scratch']
  #allocation2 [shape = 'f32[2,32]{1,0:T(2,128)}', space=vmem, size = 0x400, scoped, tag = 'scratch operand']
  #allocation3 [shape = 'f32[2,1]{1,0:T(2,128)}', space=vmem, size = 0x400, scoped, tag = 'scratch operand']
  %s0 = inlined_call_operand.hbm [shape: f32[2,8,32], index: 0, kind: input, shape index: {}]
  %s1 = inlined_call_operand.vmem [shape: s32[2,1,1], index: 1, kind: input, shape index: {}]
  %s2 = inlined_call_operand.vmem [shape: f32[2,32], index: 2, kind: input, shape index: {}]
  %s3 = inlined_call_operand.vmem [shape: f32[1,2], index: 3, kind: input, shape index: {}]
  %s4 = inlined_call_operand.hbm [shape: f32[2,2], index: 4, kind: output, shape index: {}]
  %s5 = sld [smem:[#allocation0]]
  $region38: #{tpu_custom_call.1} parent=0
    _
  %s7 = ssub.s32 1, %s5
  %s8 = scalar_select 0, %s7, %s5
  $region1: #{tpu_custom_call.1} parent=0
    #allocation4 [shape = 'u8[8192]{0}', space=vmem, size = 0x2000, scoped, tag = 'input window, operand 0, single buffered']
    #allocation5 [shape = 's32[1]{0}', space=sflag, size = 0x4, scoped, tag = 'scoped memory for tpu_custom_call.1']
    #allocation6 [shape = 's32[1]{0}', space=sflag, size = 0x4, scoped, tag = 'scoped memory for tpu_custom_call.1']
    #allocation7 [shape = 'u8[1024]{0}', space=vmem, size = 0x400, scoped, tag = 'output window, operand 0, single buffered']
    %9 = vsyncpa [#allocation5], 0
    %10 = vsyncpa [#allocation6], 0
    // Predicated region
    $region2: #{tpu_custom_call.1} parent=1 // pred_check
      _
    $region3: #{tpu_custom_call.1} parent=1 // pred_check_branch
      %12 = sbr.rel (0) target = $region5
    $region4: #{tpu_custom_call.1} parent=1 // pred_region
      %14 = vsyncadd [#allocation5], 0
      %s15 = sshll.u32 %s0, 4
      %s16 = int_to_ptr.hbm [resolvable:$true] %s15
      %s17 = sshll.u32 [#allocation4], 4
      %s18 = int_to_ptr.vmem [resolvable:$true] %s17
      %23 = dma.hbm_to_vmem [thread:$0]  %s16, 256, %s18, [#allocation5], 128, 128, 8
    $region5: #{tpu_custom_call.1} parent=1 // pred_fallthru
      _
    // Predicated region
    $region6: #{tpu_custom_call.1} parent=1 // pred_check
      _
    $region7: #{tpu_custom_call.1} parent=1 // pred_check_branch
      %25 = sbr.rel (0) target = $region9
    $region8: #{tpu_custom_call.1} parent=1 // pred_region
      _
    $region9: #{tpu_custom_call.1} parent=1 // pred_fallthru
      _
    // Predicated region
    $region10: #{tpu_custom_call.1} parent=1 // pred_check
      _
    $region11: #{tpu_custom_call.1} parent=1 // pred_check_branch
      %27 = sbr.rel (0) target = $region13
    $region12: #{tpu_custom_call.1} parent=1 // pred_region
      _
    $region13: #{tpu_custom_call.1} parent=1 // pred_fallthru
      _
    // Predicated region
    $region14: #{tpu_custom_call.1} parent=1 // pred_check
      _
    $region15: #{tpu_custom_call.1} parent=1 // pred_check_branch
      %29 = sbr.rel (0) target = $region17
    $region16: #{tpu_custom_call.1} parent=1 // pred_region
      _
    $region17: #{tpu_custom_call.1} parent=1 // pred_fallthru
      _
    // Predicated region
    $region18: #{tpu_custom_call.1} parent=1 // pred_check
      _
    $region19: #{tpu_custom_call.1} parent=1 // pred_check_branch
      %31 = sbr.rel (0) target = $region21
    $region20: #{tpu_custom_call.1} parent=1 // pred_region
      %33 = dma.done [#allocation5], 256
    $region21: #{tpu_custom_call.1} parent=1 // pred_fallthru
      _
    %p34 = scmp.eq.s32.totalorder 0, 0
    // Predicated region
    $region22: #{tpu_custom_call.1} parent=1 // pred_check
      %p35 = pneg %p34
    $region23: #{tpu_custom_call.1} parent=1 // pred_check_branch
      %37 = sbr.rel (%p35) target = $region25
    $region24: #{tpu_custom_call.1} parent=1 // pred_region
      %vm38 = vcmask 254976
      %39 = vst.msk [vmem:[#allocation2] sm:$0x3] %vm38, 0.0
      %vm40 = vcmask 1024
      %41 = vst.msk [vmem:[#allocation3] sm:$0x3] %vm40, 0.0
    $region25: #{tpu_custom_call.1} parent=1 // pred_fallthru
      _
    %v42 = vld [vmem:[#allocation4] sm:$0xff]
    %v43 = vld [vmem:[#allocation4 + $0x8] sm:$0xff]
    %v44 = vlaneseq
    %v45 = vshrl.u32 %v44, 7
    %s46 = smul.u32 0, 8
    %v47 = vstv %s46
    %v48 = vadd.s32 %v45, %v47
    %v49 = vld [vmem:[%s1] sm:$0x1]
    %v50 = vld [vmem:[%s1 + $0x1] sm:$0x1]
    %v51 = vperm.slane %v49, 0
    %v52 = vperm.slane %v50, 0
    %vm53 = vcmp.lt.s32.totalorder %v48, %v51
    %vm54 = vcmp.lt.s32.totalorder %v48, %v52
    %v55 = vsel %vm53, 1, 0
    %v56 = vsel %vm54, 1, 0
    %v57 = vcvt.s32.f32 %v55
    %v58 = vcvt.s32.f32 %v56
    %v59 = vld [vmem:[#allocation2] sm:$0x3]
    %61 = vset.pattern.permute.xlu0 0
    %62 = vperm.xlu0 %61, %v57
    %v63 = vpop.permute.xlu0 %62
    %66 = vset.pattern.permute.xlu0 0
    %67 = vperm.xlu0 %66, %v58
    %v68 = vpop.permute.xlu0 %67
    %v70 = vmul.f32 %v42, %v63
    %v71 = vmul.f32 %v43, %v68
    %vm72 = vcmask 261120
    %v73 = vsel %vm72, %v70, 0.0
    %v74 = vrot.slane %v73, 4
    %v75 = vadd.f32 %v73, %v74
    %v76 = vrot.slane %v75, 2
    %v77 = vadd.f32 %v75, %v76
    %v78 = vrot.slane %v77, 1
    %v79 = vadd.f32 %v77, %v78
    %v80 = vsel %vm72, %v71, 0.0
    %v81 = vrot.slane %v80, 4
    %v82 = vadd.f32 %v80, %v81
    %v83 = vrot.slane %v82, 2
    %v84 = vadd.f32 %v82, %v83
    %v85 = vrot.slane %v84, 1
    %v86 = vadd.f32 %v84, %v85
    %vm89 = vcmask 1041409
    %v90 = vsel %vm89, %v86, %v79
    %v92 = vadd.f32 %v59, %v90
    %vm93 = vcmask 254976
    %94 = vst.msk [vmem:[#allocation2] sm:$0x3] %vm93, %v92
    %v95 = vld [vmem:[#allocation3] sm:$0x3]
    %vm96 = vcmask 7168
    %v97 = vsel %vm96, %v57, 0.0
    %v98 = vrot.slane %v97, 4
    %v99 = vadd.f32 %v97, %v98
    %v100 = vrot.slane %v99, 2
    %v101 = vadd.f32 %v99, %v100
    %v102 = vrot.slane %v101, 1
    %v103 = vadd.f32 %v101, %v102
    %v104 = vsel %vm96, %v58, 0.0
    %v105 = vrot.slane %v104, 4
    %v106 = vadd.f32 %v104, %v105
    %v107 = vrot.slane %v106, 2
    %v108 = vadd.f32 %v106, %v107
    %v109 = vrot.slane %v108, 1
    %v110 = vadd.f32 %v108, %v109
    %v113 = vsel %vm89, %v110, %v103
    %v115 = vadd.f32 %v95, %v113
    %vm116 = vcmask 1024
    %117 = vst.msk [vmem:[#allocation3] sm:$0x3] %vm116, %v115
    // Predicated region
    $region26: #{tpu_custom_call.1} parent=1 // pred_check
      %p118 = pneg %p34
    $region27: #{tpu_custom_call.1} parent=1 // pred_check_branch
      %120 = sbr.rel (%p118) target = $region29
    $region28: #{tpu_custom_call.1} parent=1 // pred_region
      %v121 = vld [vmem:[#allocation3] sm:$0x3]
      %v122 = vmax.f32 %v121, 1e-09
      %v123 = vld [vmem:[#allocation2] sm:$0x3]
      %125 = vset.pattern.permute.xlu0 0
      %126 = vperm.xlu0 %125, %v122
      %v127 = vpop.permute.xlu0 %126
      %v129 = vrcp.pop %v127
      %v130 = vmul.f32 %v127, %v129
      %v131 = vsub.f32 1.0, %v130
      %v132 = vmul.f32 %v129, %v131
      %v133 = vadd.f32 %v129, %v132
      %vm134 = vweird.f32 %v127
      %vm135 = vweird.f32 %v129
      %vm136 = vmor %vm134, %vm135
      %v137 = vsel %vm136, %v129, %v133
      %v138 = vand.u32 2147483647, %v127
      %vm139 = vcmp.eq.f32.partialorder %v138, 8.507059e+37
      %v140 = vand.u32 %v127, 2147483648
      %v141 = vor.u32 1.1754944e-38, %v140
      %v142 = vsel %vm139, %v141, %v137
      %v143 = vmul.f32 %v123, %v142
      %v144 = vld [vmem:[%s2] sm:$0x3]
      %v145 = vld [vmem:[%s3] sm:$0x1]
      %v147 = vperm.slane %v145, 0
      %v150 = vsel %vm72, %v143, 0
      %v153 = vsel %vm72, %v144, 0
      %155 = vmatpush.xpose.msra.mxu0 0.0
      %156 = vmatpush.xpose.msra.mxu0 0.0
      %157 = vmatpush.xpose.msra.mxu0 0.0
      %158 = vmatpush.xpose.msra.mxu0 0.0
      %159 = vmatpush.xpose.msra.mxu0 0.0
      %160 = vmatpush.xpose.msra.mxu0 0.0
      %161 = vmatpush.xpose.msra.mxu0 0.0
      %162 = vmatpush.xpose.msra.mxu0 0.0
      %163 = vmatpush.xpose.msra.mxu0 0.0
      %164 = vmatpush.xpose.msra.mxu0 0.0
      %165 = vmatpush.xpose.msra.mxu0 0.0
      %166 = vmatpush.xpose.msra.mxu0 0.0
      %167 = vmatpush.xpose.msra.mxu0 0.0
      %168 = vmatpush.xpose.msra.mxu0 0.0
      %169 = vmatpush.xpose.msra.mxu0 0.0
      %170 = vmatpush.xpose.msra.mxu0 %v153
      %171 = vmatmul.f32.gmra.mxu0 %v150
      %v172 = vpop.f32.mrf.mxu0
      %v173 = vadd.f32 %v147, %v172
      %174 = vdwg.mxu0
      %vm175 = vcmask 9216
      %176 = vst.msk [vmem:[#allocation7] sm:$0x3] %vm175, %v173
    $region29: #{tpu_custom_call.1} parent=1 // pred_fallthru
      _
    // Predicated region
    $region30: #{tpu_custom_call.1} parent=1 // pred_check
      _
    $region31: #{tpu_custom_call.1} parent=1 // pred_check_branch
      %178 = sbr.rel (0) target = $region33
    $region32: #{tpu_custom_call.1} parent=1 // pred_region
      %180 = vsyncadd [#allocation6], 0
      %s182 = sshll.u32 [#allocation7], 4
      %s183 = int_to_ptr.vmem [resolvable:$true] %s182
      %s184 = sshll.u32 %s4, 4
      %s185 = int_to_ptr.hbm [resolvable:$true] %s184
      %187 = dma.vmem_to_hbm [thread:$0]  %s183, 32, %s185, [#allocation6]
    $region33: #{tpu_custom_call.1} parent=1 // pred_fallthru
      _
    // Predicated region
    $region34: #{tpu_custom_call.1} parent=1 // pred_check
      _
    $region35: #{tpu_custom_call.1} parent=1 // pred_check_branch
      %189 = sbr.rel (0) target = $region37
    $region36: #{tpu_custom_call.1} parent=1 // pred_region
      %191 = dma.done [#allocation6], 32
    $region37: #{tpu_custom_call.1} parent=1 // pred_fallthru
      _
    %192 = vsyncpa [#allocation5], 1
    %193 = vsyncpa [#allocation6], 1

</llo_original>
